<compile_context>
chip_gen: v6e
topology: v6e:2x2x1
jax: 0.10.0
libtpu: 0.0.40
codegen_flags: <defaults>
</compile_context>

<pallas_src>
import jax
import jax.numpy as jnp
from jax import lax
from jax.experimental import pallas as pl
from jax.experimental.pallas import tpu as pltpu


def _round_up(n, m):
    return ((n + m - 1) // m) * m


def top_net_kernel(x_ref, w_ref, b_ref, o_ref):
    # x_ref: [TILE_B, IN]    (VMEM, streamed / double-buffered)
    # w_ref: [1, IN]         (VMEM, constant block index -> stays resident)
    # b_ref: [1]             (SMEM scalar)
    # o_ref: [1, 1, TILE_B]  (VMEM, lane-dense output tile)
    #
    # 40 -> 1 projection as a lane-dense MXU contraction: (1,IN) @ (TILE_B,IN)^T.
    z = lax.dot_general(
        w_ref[...], x_ref[...],
        dimension_numbers=(((1,), (1,)), ((), ())),
        preferred_element_type=jnp.float32,
    )                                       # [1, TILE_B], every lane live
    z = z + b_ref[0]                        # scalar bias read from SMEM
    # sigmoid: exp and approximate reciprocal both issue on the otherwise-idle
    # EUP slot; all math stays f32 (v5e has no bf16 EUP/VPU path).
    y = pl.reciprocal(1.0 + jnp.exp(-z), approx=True)
    o_ref[...] = y.reshape(o_ref.shape)     # unmasked full-width store


def _pick_tile_and_vmem():
    """Generation-aware defaults: biggest streaming tile that leaves VMEM headroom."""
    try:
        vmem_bytes = pltpu.get_tpu_info().vmem_capacity_bytes
    except Exception:
        vmem_bytes = 64 * 1024 * 1024       # conservative fallback (v7x per-TC size)
    if vmem_bytes <= 64 * 1024 * 1024:
        # v7x: 64 MiB per TensorCore -> ~17.8 MiB double-buffered at 16K rows.
        return 16384, 32 * 1024 * 1024
    # v5e / v6e: 128 MiB physical -> larger tiles with a raised scoped-VMEM limit.
    return 32768, 64 * 1024 * 1024


def top_net_forward(x, w, b, *, tile_b=None):
    """x: [B, 40] f32, w: [1, 40] f32 (PyTorch [out,in] layout), b: [1] f32 -> [B, 1] f32."""
    B, IN = x.shape
    OUT = w.shape[0]
    assert w.shape == (OUT, IN) and b.shape == (OUT,) and OUT == 1

    default_tile, vmem_limit = _pick_tile_and_vmem()
    if tile_b is None:
        tile_b = min(default_tile, _round_up(B, 8))
    tile_b = _round_up(tile_b, 8)           # (8, 128) second-to-last-dim rule for the x block

    B_pad = _round_up(B, tile_b)
    if B_pad != B:
        x = jnp.pad(x, ((0, B_pad - B), (0, 0)))   # tail rows give sigmoid(b), sliced off below
    num_tiles = B_pad // tile_b

    cost = pl.CostEstimate(
        flops=2 * B_pad * IN,                           # 40 mul + 40 add per row
        transcendentals=2 * B_pad,                      # exp + reciprocal per row
        bytes_accessed=B_pad * (IN + 1) * 4 + (IN + 1) * 4,
    )

    out = pl.pallas_call(
        top_net_kernel,
        out_shape=jax.ShapeDtypeStruct((num_tiles, 1, tile_b), jnp.float32),
        grid=(num_tiles,),
        in_specs=[
            pl.BlockSpec((tile_b, IN), lambda i: (i, 0)),        # x: one batch tile per step
            pl.BlockSpec((OUT, IN), lambda i: (0, 0)),           # w: constant index -> resident
            pl.BlockSpec(memory_space=pltpu.MemorySpace.SMEM),   # b: whole (1,) array in SMEM
        ],
        out_specs=pl.BlockSpec((1, 1, tile_b), lambda i: (i, 0, 0)),  # lane-dense output tile
        compiler_params=pltpu.CompilerParams(
            dimension_semantics=("parallel",),   # batch tiles shard across v7x's 2 TCs
            vmem_limit_bytes=vmem_limit,
        ),
        cost_estimate=cost,
    )(x, w, b)

    return out.reshape(B_pad, OUT)[:B]


def init_params(key, in_features=40, out_features=1):
    # PyTorch nn.Linear default init: U(-1/sqrt(in), 1/sqrt(in)); weight kept in
    # PyTorch's [out_features, in_features] layout (exactly the LHS row the MXU needs).
    kw, kb = jax.random.split(key)
    bound = 1.0 / jnp.sqrt(jnp.float32(in_features))
    w = jax.random.uniform(kw, (out_features, in_features), jnp.float32, -bound, bound)
    b = jax.random.uniform(kb, (out_features,), jnp.float32, -bound, bound)
    return w, b


if __name__ == "__main__":
    key = jax.random.PRNGKey(0)
    kx, kp = jax.random.split(key)

    IN, OUT = 40, 1
    B = 20                      # deliberately NOT a multiple of the tile: exercises pad + slice path
    x = jax.random.normal(kx, (B, IN), dtype=jnp.float32)
    w, b = init_params(kp, IN, OUT)

    y_ref = jax.nn.sigmoid(x @ w.T + b)

    # multi-tile pipelined path at a tiny size (3 tiles of 8 rows, 4 padded rows)
    y = top_net_forward(x, w, b, tile_b=8)
    jax.block_until_ready(y)
    assert y.shape == (B, OUT)
    assert jnp.allclose(y, y_ref, atol=5e-3, rtol=5e-3)   # approx reciprocal -> relaxed tol

    # default (generation-gated, large-tile) selection path
    y2 = top_net_forward(x, w, b)
    jax.block_until_ready(y2)
    assert jnp.allclose(y2, y_ref, atol=5e-3, rtol=5e-3)

    # a slightly larger ragged batch to exercise multi-tile lane-dense stores
    B2 = 300
    x2 = jax.random.normal(jax.random.PRNGKey(1), (B2, IN), dtype=jnp.float32)
    y3 = top_net_forward(x2, w, b, tile_b=128)
    jax.block_until_ready(y3)
    y3_ref = jax.nn.sigmoid(x2 @ w.T + b)
    assert y3.shape == (B2, OUT)
    assert jnp.allclose(y3, y3_ref, atol=5e-3, rtol=5e-3)

    print("KERNEL_OK")
</pallas_src>

<mosaic_0001>
module attributes {stable_mosaic.version = 11 : i64} {
  func.func @top_net_kernel(%arg0: i32, %arg1: memref<8x40xf32, #tpu.memory_space<vmem>>, %arg2: memref<1x40xf32, #tpu.memory_space<vmem>>, %arg3: memref<1xf32, #tpu.memory_space<smem>>, %arg4: memref<1x1x8xf32, #tpu.memory_space<vmem>>) attributes {dimension_semantics = [#tpu.dimension_semantics<parallel>], iteration_bounds = array<i64: 3>, scalar_prefetch = 0 : i64, scratch_operands = 0 : i64, tpu.core_type = #tpu.core_type<tc>, window_params = [{transform_indices = @transform_0, window_bounds = array<i64: 8, 40>}, {pipeline_mode = #tpu.pipeline_mode<synchronous>, transform_indices = @transform_1, window_bounds = array<i64: 1, 40>}, {transform_indices = @transform_2, window_bounds = array<i64: 1>}, {transform_indices = @transform_3, window_bounds = array<i64: 1, 1, 8>}]} {
    %c0 = arith.constant 0 : index
    %c0_0 = arith.constant 0 : index
    %0 = vector.load %arg2[%c0, %c0_0] : memref<1x40xf32, #tpu.memory_space<vmem>>, vector<1x40xf32>
    %c0_1 = arith.constant 0 : index
    %c0_2 = arith.constant 0 : index
    %1 = vector.load %arg1[%c0_1, %c0_2] : memref<8x40xf32, #tpu.memory_space<vmem>>, vector<8x40xf32>
    %cst = arith.constant dense<0.000000e+00> : vector<1x8xf32>
    %2 = tpu.matmul %0, %1, %cst {dimension_numbers = #tpu.dot_dimension_numbers<[1], [1], [0], [0], [0, 0, 1, 0], [], []>} : vector<1x40xf32>, vector<8x40xf32>, vector<1x8xf32> -> vector<1x8xf32>
    %c0_3 = arith.constant 0 : index
    %3 = memref.load %arg3[%c0_3] : memref<1xf32, #tpu.memory_space<smem>>
    %4 = vector.broadcast %3 : f32 to vector<1x8xf32>
    %5 = arith.addf %2, %4 : vector<1x8xf32>
    %cst_4 = arith.constant 0.000000e+00 : f32
    %6 = vector.broadcast %cst_4 : f32 to vector<1x8xf32>
    %7 = arith.subf %6, %5 : vector<1x8xf32>
    %8 = math.exp %7 : vector<1x8xf32>
    %cst_5 = arith.constant 1.000000e+00 : f32
    %9 = vector.broadcast %cst_5 : f32 to vector<1x8xf32>
    %10 = arith.addf %9, %8 : vector<1x8xf32>
    %11 = tpu.reciprocal %10 {approx = true} : vector<1x8xf32> -> vector<1x8xf32>
    %12 = vector.shape_cast %11 : vector<1x8xf32> to vector<1x1x8xf32>
    %c0_6 = arith.constant 0 : index
    %c0_7 = arith.constant 0 : index
    %c0_8 = arith.constant 0 : index
    %13 = vector.load %arg4[%c0_6, %c0_7, %c0_8] : memref<1x1x8xf32, #tpu.memory_space<vmem>>, vector<1x1x8xf32>
    tpu.vector_store %arg4[%c0_6, %c0_7, %c0_8], %12 {strides = array<i32>} : memref<1x1x8xf32, #tpu.memory_space<vmem>>, vector<1x1x8xf32>,
    return
  }
  func.func @transform_0(%arg0: i32) -> (i32, i32) {
    %c0_i32 = arith.constant 0 : i32
    %c0_i32_0 = arith.constant 0 : i32
    return %arg0, %c0_i32 : i32, i32
  }
  func.func @transform_1(%arg0: i32) -> (i32, i32) {
    %c0_i32 = arith.constant 0 : i32
    %c0_i32_0 = arith.constant 0 : i32
    %c0_i32_1 = arith.constant 0 : i32
    return %c0_i32, %c0_i32_0 : i32, i32
  }
  func.func @transform_2(%arg0: i32) -> i32 {
    %c0_i32 = arith.constant 0 : i32
    %c0_i32_0 = arith.constant 0 : i32
    return %c0_i32 : i32
  }
  func.func @transform_3(%arg0: i32) -> (i32, i32, i32) {
    %c0_i32 = arith.constant 0 : i32
    %c0_i32_0 = arith.constant 0 : i32
    %c0_i32_1 = arith.constant 0 : i32
    return %arg0, %c0_i32, %c0_i32_0 : i32, i32, i32
  }
}

</mosaic_0001>

<llo_original>
// kernel: tpu_custom_call.1
$region0: #{tpu_custom_call.1}
  #allocation0 [shape = 'u32[]', space=smem, size = 0x4, offset = 0x4, fixed_abs, tag = 'smem constant byte address 0x4 - core index']
  #allocation1 [shape = 'u32[144,128]{1,0:T(1,128)}', space=vmem, size = 0x12000, scoped, tag = 'internal scratch']
  #allocation2 [shape = 'f32[1]{0:T(128)S(6)}', space=smem, size = 0x200, scoped, tag = 'scoped memory for tpu_custom_call.1']
  %s0 = inlined_call_operand.hbm [shape: f32[24,40], index: 0, kind: input, shape index: {}]
  %s1 = inlined_call_operand.vmem [shape: f32[1,40], index: 1, kind: input, shape index: {}]
  %s2 = inlined_call_operand.<no memory space> [shape: f32[1], index: 2, kind: input, shape index: {}]
  %s3 = inlined_call_operand.hbm [shape: f32[3,1,8], index: 3, kind: output, shape index: {}]
  %s4 = sld [smem:[#allocation0]]
  $region49: #{tpu_custom_call.1} parent=0
    _
  %s6 = ssub.s32 1, %s4
  %s7 = scalar_select 0, %s6, %s4
  %8 = sst [smem:[#allocation2]] %s2
  $region1: #{tpu_custom_call.1} parent=0
    #allocation3 [shape = 'u8[8192]{0}', space=vmem, size = 0x2000, scoped, tag = 'input window, operand 0']
    #allocation4 [shape = 's32[2]{0}', space=sflag, size = 0x8, scoped, tag = 'scoped memory for tpu_custom_call.1']
    #allocation5 [shape = 's32[2]{0}', space=sflag, size = 0x8, scoped, tag = 'scoped memory for tpu_custom_call.1']
    #allocation6 [shape = 'u8[1024]{0}', space=vmem, size = 0x400, scoped, tag = 'output window, operand 0']
    %9 = vsyncpa [#allocation4], 0
    %s10 = scalar_lea.sflag [#allocation4], 1
    %11 = vsyncpa %s10, 0
    %12 = vsyncpa [#allocation5], 0
    %s13 = scalar_lea.sflag [#allocation5], 1
    %14 = vsyncpa %s13, 0
    loop: start=0, step=1, limit=5
    $region2: #{tpu_custom_call.1} parent=1 // loop_pre_header
      _
    $region3: #{tpu_custom_call.1} parent=1 // loop_header
      %s16 = sphi 0, %s20
      %p17 = scmp.ge.s32.totalorder %s16, 5
      %s26 = sphi 0, %s28
      %s29 = sphi 0, %s26
      %s30 = sphi 0, %s29
      %s46 = sphi 0, %s30
      %s50 = sphi 0, %s50
      %s52 = sphi 0, %s50
      %s53 = sphi 0, %s52
      %s67 = sphi 0, %s53
      %s71 = sphi 0, %s71
      %s73 = sphi 0, %s71
      %s74 = sphi 0, %s73
      %s88 = sphi 0, %s74
      %s94 = sphi 0, %s96
      %s97 = sphi 0, %s94
      %s98 = sphi 0, %s97
      %s114 = sphi 0, %s98
    $region4: #{tpu_custom_call.1} parent=1 // loop_header_branch
      %19 = sbr.rel (%p17) target = $region8
    $region5: #{tpu_custom_call.1} parent=1 // loop_body
      %s21 = ssub.s32 %s16, 1
      %s22 = ssub.s32 %s16, 2
      %s23 = sadd.s32 %s16, 1
      %s24 = ssub.s32 %s16, %s23
      %p25 = scmp.eq.s32.totalorder %s24, 0
      %s27 = sadd.s32 %s26, 1
      %s28 = scalar_select %p25, %s26, %s27
      %p31 = pneg %p25
      %p32 = scmp.eq.s32.totalorder %s16, 2
      %p33 = por %p31, %p32
      %p34 = scmp.ne.s32.totalorder %s26, %s29
      %p35 = scmp.eq.s32.totalorder %s16, 0
      %p36 = por %p34, %p35
      %p37 = scmp.ne.s32.totalorder %s26, %s29
      %p38 = scmp.eq.s32.totalorder %s21, 2
      %p39 = por %p37, %p38
      %p40 = scmp.ne.s32.totalorder %s29, %s30
      %p41 = scmp.eq.s32.totalorder %s21, 0
      %p42 = por %p40, %p41
      %p43 = scmp.ne.s32.totalorder %s29, %s30
      %p44 = scmp.eq.s32.totalorder %s22, 2
      %p45 = por %p43, %p44
      %p47 = scmp.ne.s32.totalorder %s30, %s46
      %p48 = scmp.eq.s32.totalorder %s22, 0
      %p49 = por %p47, %p48
      %s51 = sadd.s32 %s50, 1
      %p54 = scmp.eq.s32.totalorder %s16, 2
      %p55 = scmp.ne.s32.totalorder %s50, %s52
      %p56 = scmp.eq.s32.totalorder %s16, 0
      %p57 = por %p55, %p56
      %p58 = scmp.ne.s32.totalorder %s50, %s52
      %p59 = scmp.eq.s32.totalorder %s21, 2
      %p60 = por %p58, %p59
      %p61 = scmp.ne.s32.totalorder %s52, %s53
      %p62 = scmp.eq.s32.totalorder %s21, 0
      %p63 = por %p61, %p62
      %p64 = scmp.ne.s32.totalorder %s52, %s53
      %p65 = scmp.eq.s32.totalorder %s22, 2
      %p66 = por %p64, %p65
      %p68 = scmp.ne.s32.totalorder %s53, %s67
      %p69 = scmp.eq.s32.totalorder %s22, 0
      %p70 = por %p68, %p69
      %s72 = sadd.s32 %s71, 1
      %p75 = scmp.eq.s32.totalorder %s16, 2
      %p76 = scmp.ne.s32.totalorder %s71, %s73
      %p77 = scmp.eq.s32.totalorder %s16, 0
      %p78 = por %p76, %p77
      %p79 = scmp.ne.s32.totalorder %s71, %s73
      %p80 = scmp.eq.s32.totalorder %s21, 2
      %p81 = por %p79, %p80
      %p82 = scmp.ne.s32.totalorder %s73, %s74
      %p83 = scmp.eq.s32.totalorder %s21, 0
      %p84 = por %p82, %p83
      %p85 = scmp.ne.s32.totalorder %s73, %s74
      %p86 = scmp.eq.s32.totalorder %s22, 2
      %p87 = por %p85, %p86
      %p89 = scmp.ne.s32.totalorder %s74, %s88
      %p90 = scmp.eq.s32.totalorder %s22, 0
      %p91 = por %p89, %p90
      %s92 = ssub.s32 %s16, %s23
      %p93 = scmp.eq.s32.totalorder %s92, 0
      %s95 = sadd.s32 %s94, 1
      %s96 = scalar_select %p93, %s94, %s95
      %p99 = pneg %p93
      %p100 = scmp.eq.s32.totalorder %s16, 2
      %p101 = por %p99, %p100
      %p102 = scmp.ne.s32.totalorder %s94, %s97
      %p103 = scmp.eq.s32.totalorder %s16, 0
      %p104 = por %p102, %p103
      %p105 = scmp.ne.s32.totalorder %s94, %s97
      %p106 = scmp.eq.s32.totalorder %s21, 2
      %p107 = por %p105, %p106
      %p108 = scmp.ne.s32.totalorder %s97, %s98
      %p109 = scmp.eq.s32.totalorder %s21, 0
      %p110 = por %p108, %p109
      %p111 = scmp.ne.s32.totalorder %s97, %s98
      %p112 = scmp.eq.s32.totalorder %s22, 2
      %p113 = por %p111, %p112
      %p115 = scmp.ne.s32.totalorder %s98, %s114
      %p116 = scmp.eq.s32.totalorder %s22, 0
      %p117 = por %p115, %p116
      %p118 = scmp.le.s32.totalorder 1, %s16
      %p119 = scmp.lt.s32.totalorder %s16, 4
      %p120 = pnand %p118, %p119
      %p121 = pneg %p120
      // Predicated region
      $region9: #{tpu_custom_call.1} parent=5 // pred_check
        _
      $region10: #{tpu_custom_call.1} parent=5 // pred_check_branch
        %123 = sbr.rel (%p120) target = $region12
      $region11: #{tpu_custom_call.1} parent=5 // pred_region
        %s124 = ssub.s32 %s16, 1
        // Predicated region
        $region13: #{tpu_custom_call.1} parent=11 // pred_check
          %p125 = pneg %p63
        $region14: #{tpu_custom_call.1} parent=11 // pred_check_branch
          %127 = sbr.rel (%p125) target = $region16
        $region15: #{tpu_custom_call.1} parent=11 // pred_region
          _
        $region16: #{tpu_custom_call.1} parent=11 // pred_fallthru
          _
        // Predicated region
        $region17: #{tpu_custom_call.1} parent=11 // pred_check
          %p128 = pneg %p84
        $region18: #{tpu_custom_call.1} parent=11 // pred_check_branch
          %130 = sbr.rel (%p128) target = $region20
        $region19: #{tpu_custom_call.1} parent=11 // pred_region
          _
        $region20: #{tpu_custom_call.1} parent=11 // pred_fallthru
          _
      $region12: #{tpu_custom_call.1} parent=5 // pred_fallthru
        _
      %p131 = scmp.lt.s32.totalorder %s16, 3
      // Predicated region
      $region21: #{tpu_custom_call.1} parent=5 // pred_check
        %p132 = pneg %p131
      $region22: #{tpu_custom_call.1} parent=5 // pred_check_branch
        %134 = sbr.rel (%p132) target = $region24
      $region23: #{tpu_custom_call.1} parent=5 // pred_region
        // Predicated region
        $region25: #{tpu_custom_call.1} parent=23 // pred_check
          %p135 = pneg %p36
        $region26: #{tpu_custom_call.1} parent=23 // pred_check_branch
          %137 = sbr.rel (%p135) target = $region28
        $region27: #{tpu_custom_call.1} parent=23 // pred_region
          %s138 = sand.u32 %s26, 1
          %s139 = scalar_lea.sflag [#allocation4], %s138
          %s140 = sand.u32 %s26, 1
          %s141 = smul.addr %s140, 8
          %s142 = scalar_lea.vmem [#allocation3], %s141
          %s144 = ssub.s32 128, 128
          %145 = vsyncadd %s139, %s144
          %s146 = smul.addr %s16, 128
          %s147 = scalar_lea.hbm %s0, %s146
          %s149 = sshll.u32 %s142, 4
          %s150 = int_to_ptr.vmem [resolvable:$true] %s149
          %152 = dma.hbm_to_vmem [thread:$0]  %s147, 128, %s150, %s139
        $region28: #{tpu_custom_call.1} parent=23 // pred_fallthru
          _
      $region24: #{tpu_custom_call.1} parent=5 // pred_fallthru
        _
      %p153 = scmp.le.s32.totalorder 1, %s16
      %p154 = scmp.lt.s32.totalorder %s16, 4
      %p155 = pnand %p153, %p154
      %p156 = pneg %p155
      // Predicated region
      $region29: #{tpu_custom_call.1} parent=5 // pred_check
        _
      $region30: #{tpu_custom_call.1} parent=5 // pred_check_branch
        %158 = sbr.rel (%p155) target = $region32
      $region31: #{tpu_custom_call.1} parent=5 // pred_region
        %s159 = ssub.s32 %s16, 1
        %s160 = sand.u32 %s29, 1
        %s161 = scalar_lea.sflag [#allocation4], %s160
        %s162 = sand.u32 %s29, 1
        %s163 = smul.addr %s162, 8
        %s164 = scalar_lea.vmem [#allocation3], %s163
        // Predicated region
        $region33: #{tpu_custom_call.1} parent=31 // pred_check
          %p165 = pneg %p42
        $region34: #{tpu_custom_call.1} parent=31 // pred_check_branch
          %167 = sbr.rel (%p165) target = $region36
        $region35: #{tpu_custom_call.1} parent=31 // pred_region
          %168 = dma.done %s161, 128
        $region36: #{tpu_custom_call.1} parent=31 // pred_fallthru
          _
        %s169 = sand.u32 %s29, 1
        %s170 = scalar_lea.sflag [#allocation4], %s169
        %s171 = sand.u32 %s29, 1
        %s172 = smul.addr %s171, 8
        %s173 = scalar_lea.vmem [#allocation3], %s172
        %p174 = pneg %p42
        %p175 = pneg %p39
        %p176 = pneg %p63
        %p177 = pneg %p60
        %p178 = pneg %p84
        %p179 = pneg %p81
        %p180 = pneg %p110
        %p181 = pneg %p107
        %s182 = sand.u32 %s97, 1
        %s183 = scalar_lea.sflag [#allocation5], %s182
        %s184 = sand.u32 %s97, 1
        %s185 = scalar_lea.vmem [#allocation6], %s184
        %v186 = vld [vmem:[%s1] sm:$0x1]
        %v187 = vld [vmem:[%s164] sm:$0xff]
        %s188 = sld [smem:[#allocation2]]
        %v189 = vstv %s188
        %vm190 = vcmask 326656
        %v192 = vsel %vm190, %v186, 0
        %v195 = vsel %vm190, %v187, 0
        %197 = vmatprep.subr.mxu0 0.0
        %198 = vmatpush1.xpose.msra.mxu0 0.0
        %199 = vmatprep.subr.mxu0 0.0
        %200 = vmatpush1.xpose.msra.mxu0 0.0
        %201 = vmatprep.subr.mxu0 0.0
        %202 = vmatpush1.xpose.msra.mxu0 0.0
        %203 = vmatprep.subr.mxu0 0.0
        %204 = vmatpush1.xpose.msra.mxu0 0.0
        %205 = vmatprep.subr.mxu0 0.0
        %206 = vmatpush1.xpose.msra.mxu0 0.0
        %207 = vmatprep.subr.mxu0 0.0
        %208 = vmatpush1.xpose.msra.mxu0 0.0
        %209 = vmatprep.subr.mxu0 0.0
        %210 = vmatpush1.xpose.msra.mxu0 0.0
        %211 = vmatprep.subr.mxu0 0.0
        %212 = vmatpush1.xpose.msra.mxu0 0.0
        %213 = vmatprep.subr.mxu0 0.0
        %214 = vmatpush1.xpose.msra.mxu0 0.0
        %215 = vmatprep.subr.mxu0 0.0
        %216 = vmatpush1.xpose.msra.mxu0 0.0
        %217 = vmatprep.subr.mxu0 0.0
        %218 = vmatpush1.xpose.msra.mxu0 0.0
        %219 = vmatprep.subr.mxu0 0.0
        %220 = vmatpush1.xpose.msra.mxu0 0.0
        %221 = vmatprep.subr.mxu0 0.0
        %222 = vmatpush1.xpose.msra.mxu0 0.0
        %223 = vmatprep.subr.mxu0 0.0
        %224 = vmatpush1.xpose.msra.mxu0 0.0
        %225 = vmatprep.subr.mxu0 0.0
        %226 = vmatpush1.xpose.msra.mxu0 0.0
        %227 = vmatprep.subr.mxu0 0.0
        %228 = vmatpush1.xpose.msra.mxu0 %v195
        %229 = vmatprep.subr.mxu0 0.0
        %230 = vmatpush2.xpose.msra.mxu0 0.0
        %231 = vmatprep.subr.mxu0 0.0
        %232 = vmatpush2.xpose.msra.mxu0 0.0
        %233 = vmatprep.subr.mxu0 0.0
        %234 = vmatpush2.xpose.msra.mxu0 0.0
        %235 = vmatprep.subr.mxu0 0.0
        %236 = vmatpush2.xpose.msra.mxu0 0.0
        %237 = vmatprep.subr.mxu0 0.0
        %238 = vmatpush2.xpose.msra.mxu0 0.0
        %239 = vmatprep.subr.mxu0 0.0
        %240 = vmatpush2.xpose.msra.mxu0 0.0
        %241 = vmatprep.subr.mxu0 0.0
        %242 = vmatpush2.xpose.msra.mxu0 0.0
        %243 = vmatprep.subr.mxu0 0.0
        %244 = vmatpush2.xpose.msra.mxu0 0.0
        %245 = vmatprep.subr.mxu0 0.0
        %246 = vmatpush2.xpose.msra.mxu0 0.0
        %247 = vmatprep.subr.mxu0 0.0
        %248 = vmatpush2.xpose.msra.mxu0 0.0
        %249 = vmatprep.subr.mxu0 0.0
        %250 = vmatpush2.xpose.msra.mxu0 0.0
        %251 = vmatprep.subr.mxu0 0.0
        %252 = vmatpush2.xpose.msra.mxu0 0.0
        %253 = vmatprep.subr.mxu0 0.0
        %254 = vmatpush2.xpose.msra.mxu0 0.0
        %255 = vmatprep.subr.mxu0 0.0
        %256 = vmatpush2.xpose.msra.mxu0 0.0
        %257 = vmatprep.subr.mxu0 0.0
        %258 = vmatpush2.xpose.msra.mxu0 0.0
        %259 = vmatprep.subr.mxu0 0.0
        %260 = vmatpush2.xpose.msra.mxu0 0.0
        %261 = vmatprep.mubr.f32.mxu0 0.0
        %262 = vmatmul.mubr.f32.gmra.mxu0 %v192
        %v263 = vpop.f32.mrf.mxu0
        %v264 = vadd.f32 %v189, %v263
        %v265 = vpop.f32.mrf.mxu0
        %266 = vdwg.mxu0
        %v267 = vsub.f32 0.0, %v264
        %v268 = vmul.f32 %v267, 1.442695
        %v269 = vpow.pop %v268
        %v270 = vadd.f32 %v269, 1.0
        %v271 = vrcp.pop %v270
        %vm272 = vcmask 57344
        %273 = vst.msk [vmem:[%s185] sm:$0x1] %vm272, %v271
        %s274 = sand.u32 %s97, 1
        %s275 = scalar_lea.sflag [#allocation5], %s274
        %s276 = sand.u32 %s97, 1
        %s277 = scalar_lea.vmem [#allocation6], %s276
        // Predicated region
        $region37: #{tpu_custom_call.1} parent=31 // pred_check
          %p278 = pneg %p107
        $region38: #{tpu_custom_call.1} parent=31 // pred_check_branch
          %280 = sbr.rel (%p278) target = $region40
        $region39: #{tpu_custom_call.1} parent=31 // pred_region
          %s282 = ssub.s32 16, 16
          %283 = vsyncadd %s275, %s282
          %s284 = smul.addr %s21, 16
          %s285 = scalar_lea.hbm %s3, %s284
          %s287 = sshll.u32 %s277, 4
          %s288 = int_to_ptr.vmem [resolvable:$true] %s287
          %290 = dma.vmem_to_hbm [thread:$0]  %s288, 16, %s285, %s275
        $region40: #{tpu_custom_call.1} parent=31 // pred_fallthru
          _
      $region32: #{tpu_custom_call.1} parent=5 // pred_fallthru
        _
      %p291 = scmp.le.s32.totalorder 2, %s16
      // Predicated region
      $region41: #{tpu_custom_call.1} parent=5 // pred_check
        %p292 = pneg %p291
      $region42: #{tpu_custom_call.1} parent=5 // pred_check_branch
        %294 = sbr.rel (%p292) target = $region44
      $region43: #{tpu_custom_call.1} parent=5 // pred_region
        %s295 = ssub.s32 %s16, 2
        // Predicated region
        $region45: #{tpu_custom_call.1} parent=43 // pred_check
          %p296 = pneg %p113
        $region46: #{tpu_custom_call.1} parent=43 // pred_check_branch
          %298 = sbr.rel (%p296) target = $region48
        $region47: #{tpu_custom_call.1} parent=43 // pred_region
          %s299 = sand.u32 %s98, 1
          %s300 = scalar_lea.sflag [#allocation5], %s299
          %s301 = sand.u32 %s98, 1
          %s302 = scalar_lea.vmem [#allocation6], %s301
          %303 = dma.done %s300, 16
        $region48: #{tpu_custom_call.1} parent=43 // pred_fallthru
          _
      $region44: #{tpu_custom_call.1} parent=5 // pred_fallthru
        _
    $region6: #{tpu_custom_call.1} parent=1 // loop_footer
      %s20 = sadd.s32 1, %s16
    $region7: #{tpu_custom_call.1} parent=1 // loop_footer_branch
      %15 = sbr.rel target = $region3
    $region8: #{tpu_custom_call.1} parent=1 // loop_exit
      _
    %304 = vsyncpa [#allocation4], 1
    %s305 = scalar_lea.sflag [#allocation4], 1
    %306 = vsyncpa %s305, 1
    %307 = vsyncpa [#allocation5], 1
    %s308 = scalar_lea.sflag [#allocation5], 1
    %309 = vsyncpa %s308, 1

</llo_original>
